<compile_context>
chip_gen: v7x
topology: tpu7x:2x2x1
jax: 0.10.0
libtpu: 0.0.40
codegen_flags: <defaults>
</compile_context>

<pallas_src>
import jax
import jax.numpy as jnp
from jax import lax
from jax.experimental import pallas as pl
from jax.experimental.pallas import tpu as pltpu


def _round_up(x, m):
    return ((x + m - 1) // m) * m


def _choose_spatial_tile(s, ts_cap):
    """Pick a lane-tile TS (multiple of 128) and the padded spatial extent.

    TS divides the padded extent, so padding is at most 127 elements/row when
    a single tile suffices, and zero when the 128-rounded extent has a
    divisor <= ts_cap."""
    ts_cap = max(128, (ts_cap // 128) * 128)
    s128 = _round_up(s, 128)
    if s128 <= ts_cap:
        return s128, s128
    n = s128 // 128
    cap_chunks = ts_cap // 128
    best = 1
    d = 1
    while d * d <= n:
        if n % d == 0:
            for c in (d, n // d):
                if c <= cap_chunks and c > best:
                    best = c
        d += 1
    return best * 128, s128


# --------------------------------------------------------------------------
# Kernel: fused one-hot target construction + per-(b,q) sigmoid-BCE mask loss
#         and dice-loss reductions, plus the per-(b,q) "class exists" count.
# --------------------------------------------------------------------------
def _mask_dice_kernel(logit_ref, tgt_ref, val_ref,
                      bce_out, dice_out, msum_out,
                      bce_acc, inter_acc, p_acc, m_acc, v_acc):
    j = pl.program_id(1)
    nq = bce_acc.shape[0]

    @pl.when(j == 0)
    def _init():
        bce_acc[...] = jnp.zeros_like(bce_acc)
        inter_acc[...] = jnp.zeros_like(inter_acc)
        p_acc[...] = jnp.zeros_like(p_acc)
        m_acc[...] = jnp.zeros_like(m_acc)
        v_acc[...] = jnp.zeros_like(v_acc)

    x = logit_ref[0].astype(jnp.float32)      # (Q, TS), upcast per-tile in VMEM
    tgt = tgt_ref[0]                          # (1, TS) int32 semantic labels
    v = val_ref[0]                            # (1, TS) f32 valid map

    # One-hot target built in-register: row q of the tile is class q.
    q_ids = lax.broadcasted_iota(jnp.int32, x.shape, 0)
    t = (tgt == q_ids).astype(jnp.float32)    # (Q, TS)

    # Shared exp(-|x|): reused for softplus and sigmoid (3 EUP ops / element).
    e = jnp.exp(-jnp.abs(x))
    softplus = jnp.log(1.0 + e)
    bce = jnp.maximum(x, 0.0) - x * t + softplus       # stable BCE-with-logits
    inv = pl.reciprocal(1.0 + e, approx=True)
    p = jnp.where(x >= 0.0, inv, e * inv)              # sigmoid(x)

    tv = t * v
    pv = p * v
    bce_acc[...] += bce * v
    inter_acc[...] += pv * t
    p_acc[...] += pv
    m_acc[...] += tv
    v_acc[...] += v                                    # shared across rows

    @pl.when(j == pl.num_programs(1) - 1)
    def _finish():
        bce_sum = jnp.sum(bce_acc[...], axis=-1, keepdims=True)   # (Q, 1)
        inter = jnp.sum(inter_acc[...], axis=-1, keepdims=True)
        psum = jnp.sum(p_acc[...], axis=-1, keepdims=True)
        msum = jnp.sum(m_acc[...], axis=-1, keepdims=True)
        vsum = jnp.sum(v_acc[...], axis=-1, keepdims=True)        # (1, 1)
        denom = jnp.maximum(vsum, 1.0)
        bce_mean = bce_sum / denom                                # (Q, 1)
        dice = 1.0 - (2.0 * inter + 1.0) / (psum + msum + 1.0)    # (Q, 1)
        bce_out[0] = jnp.broadcast_to(bce_mean, (nq, 128))
        dice_out[0] = jnp.broadcast_to(dice, (nq, 128))
        msum_out[0] = jnp.broadcast_to(msum, (nq, 128))


def _mask_dice_losses(logits_bqs, targets_bs, valid_bs, ts_cap):
    """logits_bqs: [B,Q,S] (any float dtype), targets_bs: [B,S] int32,
    valid_bs: [B,S] f32 -> per-(b,q) (bce_mean, dice, valid_class_pixel_count)."""
    B, Q, S = logits_bqs.shape
    ts, s_pad = _choose_spatial_tile(S, ts_cap)
    if s_pad != S:
        pad = s_pad - S
        logits_bqs = jnp.pad(logits_bqs, ((0, 0), (0, 0), (0, pad)))
        targets_bs = jnp.pad(targets_bs, ((0, 0), (0, pad)))
        valid_bs = jnp.pad(valid_bs, ((0, 0), (0, pad)))  # zeros => ignored

    targets_b1s = targets_bs.reshape(B, 1, s_pad)
    valid_b1s = valid_bs.reshape(B, 1, s_pad)

    grid = (B, s_pad // ts)
    out_spec = pl.BlockSpec((1, Q, 128), lambda b, s: (b, 0, 0))
    out_struct = jax.ShapeDtypeStruct((B, Q, 128), jnp.float32)

    bce_rows, dice_rows, msum_rows = pl.pallas_call(
        _mask_dice_kernel,
        grid=grid,
        in_specs=[
            pl.BlockSpec((1, Q, ts), lambda b, s: (b, 0, s)),   # mask logits
            pl.BlockSpec((1, 1, ts), lambda b, s: (b, 0, s)),   # int32 targets
            pl.BlockSpec((1, 1, ts), lambda b, s: (b, 0, s)),   # valid map
        ],
        out_specs=(out_spec, out_spec, out_spec),
        out_shape=(out_struct, out_struct, out_struct),
        scratch_shapes=[
            pltpu.VMEM((Q, ts), jnp.float32),   # bce accumulator
            pltpu.VMEM((Q, ts), jnp.float32),   # intersection accumulator
            pltpu.VMEM((Q, ts), jnp.float32),   # sigmoid-prob accumulator
            pltpu.VMEM((Q, ts), jnp.float32),   # target-mass accumulator
            pltpu.VMEM((1, ts), jnp.float32),   # valid-count accumulator
        ],
        compiler_params=pltpu.CompilerParams(
            dimension_semantics=("parallel", "arbitrary"),
            vmem_limit_bytes=32 * 1024 * 1024,
        ),
    )(logits_bqs, targets_b1s, valid_b1s)

    return bce_rows[:, :, 0], dice_rows[:, :, 0], msum_rows[:, :, 0]


# --------------------------------------------------------------------------
# Module equivalent
# --------------------------------------------------------------------------
class FocalDiceLossBceClsEmbSampleWeight:
    """JAX/Pallas port of FocalDiceLoss_bce_cls_emb_sample_weight.forward."""

    def __init__(self, class_weight=2.0, mask_weight=5.0, dice_weight=5.0,
                 loss_weight=1.0, ignore_index=17, ts_cap=4096):
        # deterministic "config" weights (cfg.class_weight / mask_weight / dice_weight)
        self.weight_dict = {
            'loss_dense_labeling_bce': class_weight,
            'loss_dense_labeling_mask': mask_weight,
            'loss_dense_labeling_dice': dice_weight,
        }
        self.loss_weight = loss_weight
        self.ignore_index = ignore_index
        self.ts_cap = ts_cap

    def __call__(self, outputs, targets, mask, modality, sample_weight=None):
        pred_logits = outputs['pred_logits'].astype(jnp.float32)   # [B, Q] (tiny)
        pred_masks = outputs['pred_masks']                         # [B, Q, H, W], dtype kept
        B, Q, H, W = pred_masks.shape
        S = H * W

        if sample_weight is None:
            sample_weight = jnp.ones((B,), jnp.float32)
        sample_weight = sample_weight.astype(jnp.float32)

        # DirectMatcher: query q is matched to semantic class q.
        targets_bs = targets.astype(jnp.int32).reshape(B, S)
        mask_bs = mask.reshape(B, S)
        valid_bs = ((targets_bs != self.ignore_index) &
                    (mask_bs > 0)).astype(jnp.float32)             # [B, S]
        logits_bqs = pred_masks.reshape(B, Q, S)                   # free reshape

        # ------------- mask BCE + dice + class-exists (Pallas hot path) ------
        bce_rows, dice_rows, msum_rows = _mask_dice_losses(
            logits_bqs, targets_bs, valid_bs, self.ts_cap)         # each [B, Q]

        w_rows = jnp.broadcast_to(sample_weight[:, None], (B, Q))
        w_sum = jnp.maximum(jnp.sum(w_rows), 1.0)
        mask_loss = jnp.sum(bce_rows * w_rows) / w_sum
        dice_loss = jnp.sum(dice_rows * w_rows) / w_sum

        # ------------- class-embedding BCE (tiny [B,Q]; plain jnp) -----------
        exists = (msum_rows > 0.0).astype(jnp.float32)             # class q present in b?
        xl = pred_logits
        bce_cls = (jnp.maximum(xl, 0.0) - xl * exists +
                   jnp.log1p(jnp.exp(-jnp.abs(xl))))
        cls_loss = jnp.sum(bce_cls * w_rows) / w_sum

        losses = {
            'loss_dense_labeling_bce': self.loss_weight * cls_loss,
            'loss_dense_labeling_mask': self.loss_weight * mask_loss,
            'loss_dense_labeling_dice': self.loss_weight * dice_loss,
        }
        # wrapper forward: multiply by weight_dict, drop anything else.
        for k in list(losses.keys()):
            if k in self.weight_dict:
                losses[k] = losses[k] * self.weight_dict[k]
            elif 'top1' in k:
                pass
            else:
                losses.pop(k)
        return losses


if __name__ == "__main__":
    key = jax.random.PRNGKey(0)
    B, Q, H, W = 2, 8, 16, 16
    k1, k2, k3, k4 = jax.random.split(key, 4)

    # bf16 mask logits: kernel upcasts per-tile in VMEM (halves hot-path HBM bytes)
    pred_masks = jax.random.normal(k1, (B, Q, H, W), jnp.float32).astype(jnp.bfloat16)
    pred_logits = jax.random.normal(k2, (B, Q), jnp.float32)
    targets = jax.random.randint(k3, (B, H, W), 0, Q).astype(jnp.int32)
    ignore_pix = jax.random.bernoulli(k4, 0.1, (B, H, W))
    targets = jnp.where(ignore_pix, jnp.int32(17), targets)   # sprinkle ignore_index
    mask = jnp.ones((B, H, W), jnp.float32)
    sample_weight = jnp.array([1.0, 0.5], jnp.float32)

    outputs = {'pred_logits': pred_logits, 'pred_masks': pred_masks}

    loss_mod = FocalDiceLossBceClsEmbSampleWeight(
        class_weight=2.0, mask_weight=5.0, dice_weight=5.0,
        loss_weight=1.0, ignore_index=17)
    losses = loss_mod(outputs, targets, mask, modality='rgb',
                      sample_weight=sample_weight)
    losses = jax.tree_util.tree_map(jax.block_until_ready, losses)

    # cross-check: force small spatial tiles so the multi-step accumulator
    # (init / accumulate / finalize across the "arbitrary" axis) is exercised.
    loss_mod_tiled = FocalDiceLossBceClsEmbSampleWeight(
        class_weight=2.0, mask_weight=5.0, dice_weight=5.0,
        loss_weight=1.0, ignore_index=17, ts_cap=128)
    losses_tiled = loss_mod_tiled(outputs, targets, mask, modality='rgb',
                                  sample_weight=sample_weight)
    losses_tiled = jax.tree_util.tree_map(jax.block_until_ready, losses_tiled)

    for k, v in losses.items():
        assert bool(jnp.isfinite(v)), f"non-finite loss {k}"
        assert bool(jnp.allclose(v, losses_tiled[k], rtol=1e-3, atol=1e-3)), \
            f"tile-size mismatch for {k}: {v} vs {losses_tiled[k]}"
    print("KERNEL_OK")
</pallas_src>

<mosaic_0001>
module attributes {stable_mosaic.version = 11 : i64} {
  func.func @_mask_dice_kernel(%arg0: i32, %arg1: i32, %arg2: memref<1x8x256xbf16, #tpu.memory_space<vmem>>, %arg3: memref<1x1x256xi32, #tpu.memory_space<vmem>>, %arg4: memref<1x1x256xf32, #tpu.memory_space<vmem>>, %arg5: memref<1x8x128xf32, #tpu.memory_space<vmem>>, %arg6: memref<1x8x128xf32, #tpu.memory_space<vmem>>, %arg7: memref<1x8x128xf32, #tpu.memory_space<vmem>>, %arg8: memref<8x256xf32, #tpu.memory_space<vmem>>, %arg9: memref<8x256xf32, #tpu.memory_space<vmem>>, %arg10: memref<8x256xf32, #tpu.memory_space<vmem>>, %arg11: memref<8x256xf32, #tpu.memory_space<vmem>>, %arg12: memref<1x256xf32, #tpu.memory_space<vmem>>) attributes {dimension_semantics = [#tpu.dimension_semantics<parallel>, #tpu.dimension_semantics<arbitrary>], iteration_bounds = array<i64: 2, 1>, scalar_prefetch = 0 : i64, scratch_operands = 5 : i64, tpu.core_type = #tpu.core_type<tc>, window_params = [{transform_indices = @transform_0, window_bounds = array<i64: 1, 8, 256>}, {transform_indices = @transform_1, window_bounds = array<i64: 1, 1, 256>}, {transform_indices = @transform_2, window_bounds = array<i64: 1, 1, 256>}, {transform_indices = @transform_3, window_bounds = array<i64: 1, 8, 128>}, {transform_indices = @transform_4, window_bounds = array<i64: 1, 8, 128>}, {transform_indices = @transform_5, window_bounds = array<i64: 1, 8, 128>}]} {
    %c0_i32 = arith.constant 0 : i32
    %0 = arith.cmpi eq, %arg1, %c0_i32 : i32
    %1 = arith.extui %0 : i1 to i32
    %c0_i32_0 = arith.constant 0 : i32
    %2 = arith.cmpi ne, %1, %c0_i32_0 : i32
    scf.if %2 {
      %cst_35 = arith.constant 0.000000e+00 : f32
      %59 = vector.broadcast %cst_35 : f32 to vector<8x256xf32>
      %c0_36 = arith.constant 0 : index
      %c0_37 = arith.constant 0 : index
      %60 = vector.load %arg8[%c0_36, %c0_37] : memref<8x256xf32, #tpu.memory_space<vmem>>, vector<8x256xf32>
      tpu.vector_store %arg8[%c0_36, %c0_37], %59 {strides = array<i32>} : memref<8x256xf32, #tpu.memory_space<vmem>>, vector<8x256xf32>,
      %cst_38 = arith.constant 0.000000e+00 : f32
      %61 = vector.broadcast %cst_38 : f32 to vector<8x256xf32>
      %c0_39 = arith.constant 0 : index
      %c0_40 = arith.constant 0 : index
      %62 = vector.load %arg9[%c0_39, %c0_40] : memref<8x256xf32, #tpu.memory_space<vmem>>, vector<8x256xf32>
      tpu.vector_store %arg9[%c0_39, %c0_40], %61 {strides = array<i32>} : memref<8x256xf32, #tpu.memory_space<vmem>>, vector<8x256xf32>,
      %cst_41 = arith.constant 0.000000e+00 : f32
      %63 = vector.broadcast %cst_41 : f32 to vector<8x256xf32>
      %c0_42 = arith.constant 0 : index
      %c0_43 = arith.constant 0 : index
      %64 = vector.load %arg10[%c0_42, %c0_43] : memref<8x256xf32, #tpu.memory_space<vmem>>, vector<8x256xf32>
      tpu.vector_store %arg10[%c0_42, %c0_43], %63 {strides = array<i32>} : memref<8x256xf32, #tpu.memory_space<vmem>>, vector<8x256xf32>,
      %cst_44 = arith.constant 0.000000e+00 : f32
      %65 = vector.broadcast %cst_44 : f32 to vector<8x256xf32>
      %c0_45 = arith.constant 0 : index
      %c0_46 = arith.constant 0 : index
      %66 = vector.load %arg11[%c0_45, %c0_46] : memref<8x256xf32, #tpu.memory_space<vmem>>, vector<8x256xf32>
      tpu.vector_store %arg11[%c0_45, %c0_46], %65 {strides = array<i32>} : memref<8x256xf32, #tpu.memory_space<vmem>>, vector<8x256xf32>,
      %cst_47 = arith.constant 0.000000e+00 : f32
      %67 = vector.broadcast %cst_47 : f32 to vector<1x256xf32>
      %c0_48 = arith.constant 0 : index
      %c0_49 = arith.constant 0 : index
      %68 = vector.load %arg12[%c0_48, %c0_49] : memref<1x256xf32, #tpu.memory_space<vmem>>, vector<1x256xf32>
      tpu.vector_store %arg12[%c0_48, %c0_49], %67 {strides = array<i32>} : memref<1x256xf32, #tpu.memory_space<vmem>>, vector<1x256xf32>,
    } else {
    }
    %c0 = arith.constant 0 : index
    %c0_1 = arith.constant 0 : index
    %c0_2 = arith.constant 0 : index
    %3 = vector.load %arg2[%c0, %c0_1, %c0_2] : memref<1x8x256xbf16, #tpu.memory_space<vmem>>, vector<1x8x256xbf16>
    %4 = vector.shape_cast %3 : vector<1x8x256xbf16> to vector<8x256xbf16>
    %5 = arith.extf %4 : vector<8x256xbf16> to vector<8x256xf32>
    %c0_3 = arith.constant 0 : index
    %c0_4 = arith.constant 0 : index
    %c0_5 = arith.constant 0 : index
    %6 = vector.load %arg3[%c0_3, %c0_4, %c0_5] : memref<1x1x256xi32, #tpu.memory_space<vmem>>, vector<1x1x256xi32>
    %7 = vector.shape_cast %6 : vector<1x1x256xi32> to vector<1x256xi32>
    %c0_6 = arith.constant 0 : index
    %c0_7 = arith.constant 0 : index
    %c0_8 = arith.constant 0 : index
    %8 = vector.load %arg4[%c0_6, %c0_7, %c0_8] : memref<1x1x256xf32, #tpu.memory_space<vmem>>, vector<1x1x256xf32>
    %9 = vector.shape_cast %8 : vector<1x1x256xf32> to vector<1x256xf32>
    %10 = tpu.iota {dimensions = array<i32: 0>} : vector<8x256xi32>
    %11 = vector.broadcast %7 : vector<1x256xi32> to vector<8x256xi32>
    %12 = arith.cmpi eq, %11, %10 : vector<8x256xi32>
    %13 = arith.extui %12 : vector<8x256xi1> to vector<8x256xi32>
    %14 = arith.sitofp %13 : vector<8x256xi32> to vector<8x256xf32>
    %15 = math.absf %5 : vector<8x256xf32>
    %cst = arith.constant 0.000000e+00 : f32
    %16 = vector.broadcast %cst : f32 to vector<8x256xf32>
    %17 = arith.subf %16, %15 : vector<8x256xf32>
    %18 = math.exp %17 : vector<8x256xf32>
    %cst_9 = arith.constant 1.000000e+00 : f32
    %19 = vector.broadcast %cst_9 : f32 to vector<8x256xf32>
    %20 = arith.addf %19, %18 : vector<8x256xf32>
    %21 = math.log %20 : vector<8x256xf32>
    %cst_10 = arith.constant 0.000000e+00 : f32
    %22 = vector.broadcast %cst_10 : f32 to vector<8x256xf32>
    %23 = arith.maximumf %5, %22 : vector<8x256xf32>
    %24 = arith.mulf %5, %14 : vector<8x256xf32>
    %25 = arith.subf %23, %24 : vector<8x256xf32>
    %26 = arith.addf %25, %21 : vector<8x256xf32>
    %cst_11 = arith.constant 1.000000e+00 : f32
    %27 = vector.broadcast %cst_11 : f32 to vector<8x256xf32>
    %28 = arith.addf %27, %18 : vector<8x256xf32>
    %29 = tpu.reciprocal %28 {approx = true} : vector<8x256xf32> -> vector<8x256xf32>
    %cst_12 = arith.constant 0.000000e+00 : f32
    %30 = vector.broadcast %cst_12 : f32 to vector<8x256xf32>
    %31 = arith.cmpf oge, %5, %30 : vector<8x256xf32>
    %32 = arith.mulf %18, %29 : vector<8x256xf32>
    %33 = arith.select %31, %29, %32 : vector<8x256xi1>, vector<8x256xf32>
    %34 = vector.broadcast %9 : vector<1x256xf32> to vector<8x256xf32>
    %35 = arith.mulf %14, %34 : vector<8x256xf32>
    %36 = vector.broadcast %9 : vector<1x256xf32> to vector<8x256xf32>
    %37 = arith.mulf %33, %36 : vector<8x256xf32>
    %c0_13 = arith.constant 0 : index
    %c0_14 = arith.constant 0 : index
    %38 = vector.load %arg8[%c0_13, %c0_14] : memref<8x256xf32, #tpu.memory_space<vmem>>, vector<8x256xf32>
    %39 = vector.broadcast %9 : vector<1x256xf32> to vector<8x256xf32>
    %40 = arith.mulf %26, %39 : vector<8x256xf32>
    %41 = arith.addf %38, %40 : vector<8x256xf32>
    %c0_15 = arith.constant 0 : index
    %c0_16 = arith.constant 0 : index
    %42 = vector.load %arg8[%c0_15, %c0_16] : memref<8x256xf32, #tpu.memory_space<vmem>>, vector<8x256xf32>
    tpu.vector_store %arg8[%c0_15, %c0_16], %41 {strides = array<i32>} : memref<8x256xf32, #tpu.memory_space<vmem>>, vector<8x256xf32>,
    %c0_17 = arith.constant 0 : index
    %c0_18 = arith.constant 0 : index
    %43 = vector.load %arg9[%c0_17, %c0_18] : memref<8x256xf32, #tpu.memory_space<vmem>>, vector<8x256xf32>
    %44 = arith.mulf %37, %14 : vector<8x256xf32>
    %45 = arith.addf %43, %44 : vector<8x256xf32>
    %c0_19 = arith.constant 0 : index
    %c0_20 = arith.constant 0 : index
    %46 = vector.load %arg9[%c0_19, %c0_20] : memref<8x256xf32, #tpu.memory_space<vmem>>, vector<8x256xf32>
    tpu.vector_store %arg9[%c0_19, %c0_20], %45 {strides = array<i32>} : memref<8x256xf32, #tpu.memory_space<vmem>>, vector<8x256xf32>,
    %c0_21 = arith.constant 0 : index
    %c0_22 = arith.constant 0 : index
    %47 = vector.load %arg10[%c0_21, %c0_22] : memref<8x256xf32, #tpu.memory_space<vmem>>, vector<8x256xf32>
    %48 = arith.addf %47, %37 : vector<8x256xf32>
    %c0_23 = arith.constant 0 : index
    %c0_24 = arith.constant 0 : index
    %49 = vector.load %arg10[%c0_23, %c0_24] : memref<8x256xf32, #tpu.memory_space<vmem>>, vector<8x256xf32>
    tpu.vector_store %arg10[%c0_23, %c0_24], %48 {strides = array<i32>} : memref<8x256xf32, #tpu.memory_space<vmem>>, vector<8x256xf32>,
    %c0_25 = arith.constant 0 : index
    %c0_26 = arith.constant 0 : index
    %50 = vector.load %arg11[%c0_25, %c0_26] : memref<8x256xf32, #tpu.memory_space<vmem>>, vector<8x256xf32>
    %51 = arith.addf %50, %35 : vector<8x256xf32>
    %c0_27 = arith.constant 0 : index
    %c0_28 = arith.constant 0 : index
    %52 = vector.load %arg11[%c0_27, %c0_28] : memref<8x256xf32, #tpu.memory_space<vmem>>, vector<8x256xf32>
    tpu.vector_store %arg11[%c0_27, %c0_28], %51 {strides = array<i32>} : memref<8x256xf32, #tpu.memory_space<vmem>>, vector<8x256xf32>,
    %c0_29 = arith.constant 0 : index
    %c0_30 = arith.constant 0 : index
    %53 = vector.load %arg12[%c0_29, %c0_30] : memref<1x256xf32, #tpu.memory_space<vmem>>, vector<1x256xf32>
    %54 = arith.addf %53, %9 : vector<1x256xf32>
    %c0_31 = arith.constant 0 : index
    %c0_32 = arith.constant 0 : index
    %55 = vector.load %arg12[%c0_31, %c0_32] : memref<1x256xf32, #tpu.memory_space<vmem>>, vector<1x256xf32>
    tpu.vector_store %arg12[%c0_31, %c0_32], %54 {strides = array<i32>} : memref<1x256xf32, #tpu.memory_space<vmem>>, vector<1x256xf32>,
    %c0_i32_33 = arith.constant 0 : i32
    %56 = arith.cmpi eq, %arg1, %c0_i32_33 : i32
    %57 = arith.extui %56 : i1 to i32
    %c0_i32_34 = arith.constant 0 : i32
    %58 = arith.cmpi ne, %57, %c0_i32_34 : i32
    scf.if %58 {
      %c0_35 = arith.constant 0 : index
      %c0_36 = arith.constant 0 : index
      %59 = vector.load %arg8[%c0_35, %c0_36] : memref<8x256xf32, #tpu.memory_space<vmem>>, vector<8x256xf32>
      %cst_37 = arith.constant dense<0.000000e+00> : vector<8xf32>
      %60 = vector.multi_reduction <add>, %59, %cst_37 [1] : vector<8x256xf32> to vector<8xf32>
      %61 = vector.shape_cast %60 : vector<8xf32> to vector<8x1xf32>
      %c0_38 = arith.constant 0 : index
      %c0_39 = arith.constant 0 : index
      %62 = vector.load %arg9[%c0_38, %c0_39] : memref<8x256xf32, #tpu.memory_space<vmem>>, vector<8x256xf32>
      %cst_40 = arith.constant dense<0.000000e+00> : vector<8xf32>
      %63 = vector.multi_reduction <add>, %62, %cst_40 [1] : vector<8x256xf32> to vector<8xf32>
      %64 = vector.shape_cast %63 : vector<8xf32> to vector<8x1xf32>
      %c0_41 = arith.constant 0 : index
      %c0_42 = arith.constant 0 : index
      %65 = vector.load %arg10[%c0_41, %c0_42] : memref<8x256xf32, #tpu.memory_space<vmem>>, vector<8x256xf32>
      %cst_43 = arith.constant dense<0.000000e+00> : vector<8xf32>
      %66 = vector.multi_reduction <add>, %65, %cst_43 [1] : vector<8x256xf32> to vector<8xf32>
      %67 = vector.shape_cast %66 : vector<8xf32> to vector<8x1xf32>
      %c0_44 = arith.constant 0 : index
      %c0_45 = arith.constant 0 : index
      %68 = vector.load %arg11[%c0_44, %c0_45] : memref<8x256xf32, #tpu.memory_space<vmem>>, vector<8x256xf32>
      %cst_46 = arith.constant dense<0.000000e+00> : vector<8xf32>
      %69 = vector.multi_reduction <add>, %68, %cst_46 [1] : vector<8x256xf32> to vector<8xf32>
      %70 = vector.shape_cast %69 : vector<8xf32> to vector<8x1xf32>
      %c0_47 = arith.constant 0 : index
      %c0_48 = arith.constant 0 : index
      %71 = vector.load %arg12[%c0_47, %c0_48] : memref<1x256xf32, #tpu.memory_space<vmem>>, vector<1x256xf32>
      %cst_49 = arith.constant dense<0.000000e+00> : vector<1xf32>
      %72 = vector.multi_reduction <add>, %71, %cst_49 [1] : vector<1x256xf32> to vector<1xf32>
      %73 = vector.shape_cast %72 : vector<1xf32> to vector<1x1xf32>
      %cst_50 = arith.constant 1.000000e+00 : f32
      %74 = vector.broadcast %cst_50 : f32 to vector<1x1xf32>
      %75 = arith.maximumf %73, %74 : vector<1x1xf32>
      %76 = vector.broadcast %75 : vector<1x1xf32> to vector<8x1xf32>
      %77 = arith.divf %61, %76 : vector<8x1xf32>
      %cst_51 = arith.constant 2.000000e+00 : f32
      %78 = vector.broadcast %cst_51 : f32 to vector<8x1xf32>
      %79 = arith.mulf %78, %64 : vector<8x1xf32>
      %cst_52 = arith.constant 1.000000e+00 : f32
      %80 = vector.broadcast %cst_52 : f32 to vector<8x1xf32>
      %81 = arith.addf %79, %80 : vector<8x1xf32>
      %82 = arith.addf %67, %70 : vector<8x1xf32>
      %cst_53 = arith.constant 1.000000e+00 : f32
      %83 = vector.broadcast %cst_53 : f32 to vector<8x1xf32>
      %84 = arith.addf %82, %83 : vector<8x1xf32>
      %85 = arith.divf %81, %84 : vector<8x1xf32>
      %cst_54 = arith.constant 1.000000e+00 : f32
      %86 = vector.broadcast %cst_54 : f32 to vector<8x1xf32>
      %87 = arith.subf %86, %85 : vector<8x1xf32>
      %88 = vector.shape_cast %77 : vector<8x1xf32> to vector<8x1xf32>
      %89 = vector.broadcast %88 : vector<8x1xf32> to vector<8x128xf32>
      %c0_55 = arith.constant 0 : index
      %c0_56 = arith.constant 0 : index
      %c0_57 = arith.constant 0 : index
      %90 = vector.load %arg5[%c0_55, %c0_56, %c0_57] : memref<1x8x128xf32, #tpu.memory_space<vmem>>, vector<1x8x128xf32>
      %91 = vector.shape_cast %90 : vector<1x8x128xf32> to vector<8x128xf32>
      %92 = vector.shape_cast %89 : vector<8x128xf32> to vector<1x8x128xf32>
      tpu.vector_store %arg5[%c0_55, %c0_56, %c0_57], %92 {strides = array<i32>} : memref<1x8x128xf32, #tpu.memory_space<vmem>>, vector<1x8x128xf32>,
      %93 = vector.shape_cast %87 : vector<8x1xf32> to vector<8x1xf32>
      %94 = vector.broadcast %93 : vector<8x1xf32> to vector<8x128xf32>
      %c0_58 = arith.constant 0 : index
      %c0_59 = arith.constant 0 : index
      %c0_60 = arith.constant 0 : index
      %95 = vector.load %arg6[%c0_58, %c0_59, %c0_60] : memref<1x8x128xf32, #tpu.memory_space<vmem>>, vector<1x8x128xf32>
      %96 = vector.shape_cast %95 : vector<1x8x128xf32> to vector<8x128xf32>
      %97 = vector.shape_cast %94 : vector<8x128xf32> to vector<1x8x128xf32>
      tpu.vector_store %arg6[%c0_58, %c0_59, %c0_60], %97 {strides = array<i32>} : memref<1x8x128xf32, #tpu.memory_space<vmem>>, vector<1x8x128xf32>,
      %98 = vector.shape_cast %70 : vector<8x1xf32> to vector<8x1xf32>
      %99 = vector.broadcast %98 : vector<8x1xf32> to vector<8x128xf32>
      %c0_61 = arith.constant 0 : index
      %c0_62 = arith.constant 0 : index
      %c0_63 = arith.constant 0 : index
      %100 = vector.load %arg7[%c0_61, %c0_62, %c0_63] : memref<1x8x128xf32, #tpu.memory_space<vmem>>, vector<1x8x128xf32>
      %101 = vector.shape_cast %100 : vector<1x8x128xf32> to vector<8x128xf32>
      %102 = vector.shape_cast %99 : vector<8x128xf32> to vector<1x8x128xf32>
      tpu.vector_store %arg7[%c0_61, %c0_62, %c0_63], %102 {strides = array<i32>} : memref<1x8x128xf32, #tpu.memory_space<vmem>>, vector<1x8x128xf32>,
    } else {
    }
    return
  }
  func.func @transform_0(%arg0: i32, %arg1: i32) -> (i32, i32, i32) {
    %c0_i32 = arith.constant 0 : i32
    %c0_i32_0 = arith.constant 0 : i32
    return %arg0, %c0_i32, %arg1 : i32, i32, i32
  }
  func.func @transform_1(%arg0: i32, %arg1: i32) -> (i32, i32, i32) {
    %c0_i32 = arith.constant 0 : i32
    %c0_i32_0 = arith.constant 0 : i32
    return %arg0, %c0_i32, %arg1 : i32, i32, i32
  }
  func.func @transform_2(%arg0: i32, %arg1: i32) -> (i32, i32, i32) {
    %c0_i32 = arith.constant 0 : i32
    %c0_i32_0 = arith.constant 0 : i32
    return %arg0, %c0_i32, %arg1 : i32, i32, i32
  }
  func.func @transform_3(%arg0: i32, %arg1: i32) -> (i32, i32, i32) {
    %c0_i32 = arith.constant 0 : i32
    %c0_i32_0 = arith.constant 0 : i32
    %c0_i32_1 = arith.constant 0 : i32
    return %arg0, %c0_i32, %c0_i32_0 : i32, i32, i32
  }
  func.func @transform_4(%arg0: i32, %arg1: i32) -> (i32, i32, i32) {
    %c0_i32 = arith.constant 0 : i32
    %c0_i32_0 = arith.constant 0 : i32
    %c0_i32_1 = arith.constant 0 : i32
    return %arg0, %c0_i32, %c0_i32_0 : i32, i32, i32
  }
  func.func @transform_5(%arg0: i32, %arg1: i32) -> (i32, i32, i32) {
    %c0_i32 = arith.constant 0 : i32
    %c0_i32_0 = arith.constant 0 : i32
    %c0_i32_1 = arith.constant 0 : i32
    return %arg0, %c0_i32, %c0_i32_0 : i32, i32, i32
  }
}

</mosaic_0001>

<llo_original>
// kernel: tpu_custom_call.1
$region0: #{tpu_custom_call.1}
  #allocation0 [shape = 'u32[]', space=smem, size = 0x4, offset = 0x4, fixed_abs, tag = 'smem constant byte address 0x4 - core index']
  #allocation1 [shape = 'u32[144,128]{1,0:T(1,128)}', space=vmem, size = 0x12000, scoped, tag = 'internal scratch']
  #allocation2 [shape = 'f32[8,256]{1,0:T(8,128)}', space=vmem, size = 0x2000, scoped, tag = 'scratch operand']
  #allocation3 [shape = 'f32[8,256]{1,0:T(8,128)}', space=vmem, size = 0x2000, scoped, tag = 'scratch operand']
  #allocation4 [shape = 'f32[8,256]{1,0:T(8,128)}', space=vmem, size = 0x2000, scoped, tag = 'scratch operand']
  #allocation5 [shape = 'f32[8,256]{1,0:T(8,128)}', space=vmem, size = 0x2000, scoped, tag = 'scratch operand']
  #allocation6 [shape = 'f32[1,256]{1,0:T(1,128)}', space=vmem, size = 0x400, scoped, tag = 'scratch operand']
  %s0 = inlined_call_operand.hbm [shape: bf16[2,8,256], index: 0, kind: input, shape index: {}]
  %s1 = inlined_call_operand.hbm [shape: s32[2,1,256], index: 1, kind: input, shape index: {}]
  %s2 = inlined_call_operand.vmem [shape: f32[2,1,256], index: 2, kind: input, shape index: {}]
  %s3 = inlined_call_operand.hbm [shape: f32[2,8,128], index: 3, kind: output, shape index: {0}]
  %s4 = inlined_call_operand.hbm [shape: f32[2,8,128], index: 4, kind: output, shape index: {1}]
  %s5 = inlined_call_operand.hbm [shape: f32[2,8,128], index: 5, kind: output, shape index: {2}]
  %6 = xla_tuple %s3, %s4, %s5
  %s7 = sld [smem:[#allocation0]]
  $region77: #{tpu_custom_call.1} parent=0
    _
  %s9 = ssub.s32 1, %s7
  %s10 = scalar_select 0, %s9, %s7
  $region1: #{tpu_custom_call.1} parent=0
    #allocation7 [shape = 'u8[8192]{0}', space=vmem, size = 0x2000, scoped, tag = 'input window, operand 0']
    #allocation8 [shape = 's32[2]{0}', space=sflag, size = 0x8, scoped, tag = 'scoped memory for tpu_custom_call.1']
    #allocation9 [shape = 's32[2]{0}', space=sflag, size = 0x8, scoped, tag = 'scoped memory for tpu_custom_call.1']
    #allocation10 [shape = 'u8[2048]{0}', space=vmem, size = 0x800, scoped, tag = 'input window, operand 1']
    #allocation11 [shape = 's32[2]{0}', space=sflag, size = 0x8, scoped, tag = 'scoped memory for tpu_custom_call.1']
    #allocation12 [shape = 'u8[8192]{0}', space=vmem, size = 0x2000, scoped, tag = 'output window, operand 0']
    #allocation13 [shape = 'u8[8192]{0}', space=vmem, size = 0x2000, scoped, tag = 'output window, operand 1']
    #allocation14 [shape = 's32[2]{0}', space=sflag, size = 0x8, scoped, tag = 'scoped memory for tpu_custom_call.1']
    #allocation15 [shape = 'u8[8192]{0}', space=vmem, size = 0x2000, scoped, tag = 'output window, operand 2']
    %11 = vsyncpa [#allocation8], 0
    %s12 = scalar_lea.sflag [#allocation8], 1
    %13 = vsyncpa %s12, 0
    %14 = vsyncpa [#allocation11], 0
    %s15 = scalar_lea.sflag [#allocation11], 1
    %16 = vsyncpa %s15, 0
    %17 = vsyncpa [#allocation9], 0
    %s18 = scalar_lea.sflag [#allocation9], 1
    %19 = vsyncpa %s18, 0
    %20 = vsyncpa [#allocation14], 0
    %s21 = scalar_lea.sflag [#allocation14], 1
    %22 = vsyncpa %s21, 0
    loop: start=0, step=1, limit=4
    $region2: #{tpu_custom_call.1} parent=1 // loop_pre_header
      _
    $region3: #{tpu_custom_call.1} parent=1 // loop_header
      %s24 = sphi 0, %s28
      %p25 = scmp.ge.s32.totalorder %s24, 4
      %s31 = sphi 0, %s43
      %s32 = sphi 0, %s39
      %s33 = sphi 0, %s31
      %s34 = sphi 0, %s32
      %s35 = sphi 0, %s33
      %s36 = sphi 0, %s34
      %s48 = sphi 0, %s50
      %s51 = sphi 0, %s48
      %s52 = sphi 0, %s51
      %s68 = sphi 0, %s52
      %s76 = sphi 0, %s78
      %s79 = sphi 0, %s76
      %s80 = sphi 0, %s79
      %s96 = sphi 0, %s80
      %s104 = sphi 0, %s106
      %s107 = sphi 0, %s104
      %s108 = sphi 0, %s107
      %s124 = sphi 0, %s108
      %s130 = sphi 0, %s132
      %s133 = sphi 0, %s130
      %s134 = sphi 0, %s133
      %s150 = sphi 0, %s134
      %s156 = sphi 0, %s158
      %s159 = sphi 0, %s156
      %s160 = sphi 0, %s159
      %s176 = sphi 0, %s160
      %s182 = sphi 0, %s184
      %s185 = sphi 0, %s182
      %s186 = sphi 0, %s185
      %s202 = sphi 0, %s186
    $region4: #{tpu_custom_call.1} parent=1 // loop_header_branch
      %27 = sbr.rel (%p25) target = $region8
    $region5: #{tpu_custom_call.1} parent=1 // loop_body
      %s29 = ssub.s32 %s24, 1
      %s30 = ssub.s32 %s24, 2
      %s37 = sadd.s32 1, %s32
      %p38 = scmp.ge.s32.totalorder %s37, 1
      %s39 = scalar_select %p38, 0, %s37
      %s40 = sadd.s32 1, %s31
      %s41 = scalar_select %p38, %s40, %s31
      %p42 = scmp.ge.s32.totalorder %s41, 2
      %s43 = scalar_select %p42, 0, %s41
      %s44 = ssub.s32 %s31, %s43
      %s45 = ssub.s32 %s32, %s39
      %s46 = sor.u32 %s44, %s45
      %p47 = scmp.eq.s32.totalorder %s46, 0
      %s49 = sadd.s32 %s48, 1
      %s50 = scalar_select %p47, %s48, %s49
      %p53 = pneg %p47
      %p54 = scmp.eq.s32.totalorder %s24, 1
      %p55 = por %p53, %p54
      %p56 = scmp.ne.s32.totalorder %s48, %s51
      %p57 = scmp.eq.s32.totalorder %s24, 0
      %p58 = por %p56, %p57
      %p59 = scmp.ne.s32.totalorder %s48, %s51
      %p60 = scmp.eq.s32.totalorder %s29, 1
      %p61 = por %p59, %p60
      %p62 = scmp.ne.s32.totalorder %s51, %s52
      %p63 = scmp.eq.s32.totalorder %s29, 0
      %p64 = por %p62, %p63
      %p65 = scmp.ne.s32.totalorder %s51, %s52
      %p66 = scmp.eq.s32.totalorder %s30, 1
      %p67 = por %p65, %p66
      %p69 = scmp.ne.s32.totalorder %s52, %s68
      %p70 = scmp.eq.s32.totalorder %s30, 0
      %p71 = por %p69, %p70
      %s72 = ssub.s32 %s31, %s43
      %s73 = ssub.s32 %s32, %s39
      %s74 = sor.u32 %s72, %s73
      %p75 = scmp.eq.s32.totalorder %s74, 0
      %s77 = sadd.s32 %s76, 1
      %s78 = scalar_select %p75, %s76, %s77
      %p81 = pneg %p75
      %p82 = scmp.eq.s32.totalorder %s24, 1
      %p83 = por %p81, %p82
      %p84 = scmp.ne.s32.totalorder %s76, %s79
      %p85 = scmp.eq.s32.totalorder %s24, 0
      %p86 = por %p84, %p85
      %p87 = scmp.ne.s32.totalorder %s76, %s79
      %p88 = scmp.eq.s32.totalorder %s29, 1
      %p89 = por %p87, %p88
      %p90 = scmp.ne.s32.totalorder %s79, %s80
      %p91 = scmp.eq.s32.totalorder %s29, 0
      %p92 = por %p90, %p91
      %p93 = scmp.ne.s32.totalorder %s79, %s80
      %p94 = scmp.eq.s32.totalorder %s30, 1
      %p95 = por %p93, %p94
      %p97 = scmp.ne.s32.totalorder %s80, %s96
      %p98 = scmp.eq.s32.totalorder %s30, 0
      %p99 = por %p97, %p98
      %s100 = ssub.s32 %s31, %s43
      %s101 = ssub.s32 %s32, %s39
      %s102 = sor.u32 %s100, %s101
      %p103 = scmp.eq.s32.totalorder %s102, 0
      %s105 = sadd.s32 %s104, 1
      %s106 = scalar_select %p103, %s104, %s105
      %p109 = pneg %p103
      %p110 = scmp.eq.s32.totalorder %s24, 1
      %p111 = por %p109, %p110
      %p112 = scmp.ne.s32.totalorder %s104, %s107
      %p113 = scmp.eq.s32.totalorder %s24, 0
      %p114 = por %p112, %p113
      %p115 = scmp.ne.s32.totalorder %s104, %s107
      %p116 = scmp.eq.s32.totalorder %s29, 1
      %p117 = por %p115, %p116
      %p118 = scmp.ne.s32.totalorder %s107, %s108
      %p119 = scmp.eq.s32.totalorder %s29, 0
      %p120 = por %p118, %p119
      %p121 = scmp.ne.s32.totalorder %s107, %s108
      %p122 = scmp.eq.s32.totalorder %s30, 1
      %p123 = por %p121, %p122
      %p125 = scmp.ne.s32.totalorder %s108, %s124
      %p126 = scmp.eq.s32.totalorder %s30, 0
      %p127 = por %p125, %p126
      %s128 = ssub.s32 %s31, %s43
      %p129 = scmp.eq.s32.totalorder %s128, 0
      %s131 = sadd.s32 %s130, 1
      %s132 = scalar_select %p129, %s130, %s131
      %p135 = pneg %p129
      %p136 = scmp.eq.s32.totalorder %s24, 1
      %p137 = por %p135, %p136
      %p138 = scmp.ne.s32.totalorder %s130, %s133
      %p139 = scmp.eq.s32.totalorder %s24, 0
      %p140 = por %p138, %p139
      %p141 = scmp.ne.s32.totalorder %s130, %s133
      %p142 = scmp.eq.s32.totalorder %s29, 1
      %p143 = por %p141, %p142
      %p144 = scmp.ne.s32.totalorder %s133, %s134
      %p145 = scmp.eq.s32.totalorder %s29, 0
      %p146 = por %p144, %p145
      %p147 = scmp.ne.s32.totalorder %s133, %s134
      %p148 = scmp.eq.s32.totalorder %s30, 1
      %p149 = por %p147, %p148
      %p151 = scmp.ne.s32.totalorder %s134, %s150
      %p152 = scmp.eq.s32.totalorder %s30, 0
      %p153 = por %p151, %p152
      %s154 = ssub.s32 %s31, %s43
      %p155 = scmp.eq.s32.totalorder %s154, 0
      %s157 = sadd.s32 %s156, 1
      %s158 = scalar_select %p155, %s156, %s157
      %p161 = pneg %p155
      %p162 = scmp.eq.s32.totalorder %s24, 1
      %p163 = por %p161, %p162
      %p164 = scmp.ne.s32.totalorder %s156, %s159
      %p165 = scmp.eq.s32.totalorder %s24, 0
      %p166 = por %p164, %p165
      %p167 = scmp.ne.s32.totalorder %s156, %s159
      %p168 = scmp.eq.s32.totalorder %s29, 1
      %p169 = por %p167, %p168
      %p170 = scmp.ne.s32.totalorder %s159, %s160
      %p171 = scmp.eq.s32.totalorder %s29, 0
      %p172 = por %p170, %p171
      %p173 = scmp.ne.s32.totalorder %s159, %s160
      %p174 = scmp.eq.s32.totalorder %s30, 1
      %p175 = por %p173, %p174
      %p177 = scmp.ne.s32.totalorder %s160, %s176
      %p178 = scmp.eq.s32.totalorder %s30, 0
      %p179 = por %p177, %p178
      %s180 = ssub.s32 %s31, %s43
      %p181 = scmp.eq.s32.totalorder %s180, 0
      %s183 = sadd.s32 %s182, 1
      %s184 = scalar_select %p181, %s182, %s183
      %p187 = pneg %p181
      %p188 = scmp.eq.s32.totalorder %s24, 1
      %p189 = por %p187, %p188
      %p190 = scmp.ne.s32.totalorder %s182, %s185
      %p191 = scmp.eq.s32.totalorder %s24, 0
      %p192 = por %p190, %p191
      %p193 = scmp.ne.s32.totalorder %s182, %s185
      %p194 = scmp.eq.s32.totalorder %s29, 1
      %p195 = por %p193, %p194
      %p196 = scmp.ne.s32.totalorder %s185, %s186
      %p197 = scmp.eq.s32.totalorder %s29, 0
      %p198 = por %p196, %p197
      %p199 = scmp.ne.s32.totalorder %s185, %s186
      %p200 = scmp.eq.s32.totalorder %s30, 1
      %p201 = por %p199, %p200
      %p203 = scmp.ne.s32.totalorder %s186, %s202
      %p204 = scmp.eq.s32.totalorder %s30, 0
      %p205 = por %p203, %p204
      %p206 = scmp.le.s32.totalorder 1, %s24
      %p207 = scmp.lt.s32.totalorder %s24, 3
      %p208 = pnand %p206, %p207
      %p209 = pneg %p208
      // Predicated region
      $region9: #{tpu_custom_call.1} parent=5 // pred_check
        _
      $region10: #{tpu_custom_call.1} parent=5 // pred_check_branch
        %211 = sbr.rel (%p208) target = $region12
      $region11: #{tpu_custom_call.1} parent=5 // pred_region
        %s212 = ssub.s32 %s24, 1
      $region12: #{tpu_custom_call.1} parent=5 // pred_fallthru
        _
      %p213 = scmp.lt.s32.totalorder %s24, 2
      // Predicated region
      $region13: #{tpu_custom_call.1} parent=5 // pred_check
        %p214 = pneg %p213
      $region14: #{tpu_custom_call.1} parent=5 // pred_check_branch
        %216 = sbr.rel (%p214) target = $region16
      $region15: #{tpu_custom_call.1} parent=5 // pred_region
        // Predicated region
        $region17: #{tpu_custom_call.1} parent=15 // pred_check
          %p217 = pneg %p58
        $region18: #{tpu_custom_call.1} parent=15 // pred_check_branch
          %219 = sbr.rel (%p217) target = $region20
        $region19: #{tpu_custom_call.1} parent=15 // pred_region
          %s220 = sand.u32 %s48, 1
          %s221 = scalar_lea.sflag [#allocation8], %s220
          %s222 = sand.u32 %s48, 1
          %s223 = smul.addr %s222, 8
          %s224 = scalar_lea.vmem [#allocation7], %s223
          %s225 = smul.u32 2, %s32
          %s227 = ssub.s32 128, 128
          %228 = vsyncadd %s221, %s227
          %s229 = smul.addr %s31, 2
          %s230 = sadd.s32 %s225, %s229
          %s231 = smul.addr %s230, 64
          %s232 = scalar_lea.hbm %s0, %s231
          %s234 = sshll.u32 %s224, 4
          %s235 = int_to_ptr.vmem [resolvable:$true] %s234
          %237 = dma.hbm_to_vmem [thread:$0]  %s232, 128, %s235, %s221
        $region20: #{tpu_custom_call.1} parent=15 // pred_fallthru
          _
        // Predicated region
        $region21: #{tpu_custom_call.1} parent=15 // pred_check
          %p238 = pneg %p86
        $region22: #{tpu_custom_call.1} parent=15 // pred_check_branch
          %240 = sbr.rel (%p238) target = $region24
        $region23: #{tpu_custom_call.1} parent=15 // pred_region
          %s241 = sand.u32 %s76, 1
          %s242 = scalar_lea.sflag [#allocation11], %s241
          %s243 = sand.u32 %s76, 1
          %s244 = smul.addr %s243, 2
          %s245 = scalar_lea.vmem [#allocation10], %s244
          %s246 = smul.u32 2, %s32
          %s248 = ssub.s32 32, 32
          %249 = vsyncadd %s242, %s248
          %s250 = smul.addr %s31, 2
          %s251 = sadd.s32 %s246, %s250
          %s252 = smul.addr %s251, 16
          %s253 = scalar_lea.hbm %s1, %s252
          %s255 = sshll.u32 %s245, 4
          %s256 = int_to_ptr.vmem [resolvable:$true] %s255
          %258 = dma.hbm_to_vmem [thread:$0]  %s253, 32, %s256, %s242
        $region24: #{tpu_custom_call.1} parent=15 // pred_fallthru
          _
        // Predicated region
        $region25: #{tpu_custom_call.1} parent=15 // pred_check
          %p259 = pneg %p114
        $region26: #{tpu_custom_call.1} parent=15 // pred_check_branch
          %261 = sbr.rel (%p259) target = $region28
        $region27: #{tpu_custom_call.1} parent=15 // pred_region
          %s262 = smul.u32 2, %s32
          %p263 = scmp.lt.s32.totalorder %s31, 1
          %s264 = scalar_select %p263, %s31, 1
          %p265 = scmp.lt.s32.totalorder %s262, 1
          %s266 = scalar_select %p265, %s262, 1
          %s267 = smul.addr %s264, 2
          %s268 = sadd.s32 %s266, %s267
          %s269 = scalar_lea.vmem %s2, %s268
          %s270 = smul.u32 2, %s32
        $region28: #{tpu_custom_call.1} parent=15 // pred_fallthru
          _
      $region16: #{tpu_custom_call.1} parent=5 // pred_fallthru
        _
      %p271 = scmp.le.s32.totalorder 1, %s24
      %p272 = scmp.lt.s32.totalorder %s24, 3
      %p273 = pnand %p271, %p272
      %p274 = pneg %p273
      // Predicated region
      $region29: #{tpu_custom_call.1} parent=5 // pred_check
        _
      $region30: #{tpu_custom_call.1} parent=5 // pred_check_branch
        %276 = sbr.rel (%p273) target = $region32
      $region31: #{tpu_custom_call.1} parent=5 // pred_region
        %s277 = ssub.s32 %s24, 1
        %s278 = sand.u32 %s51, 1
        %s279 = scalar_lea.sflag [#allocation8], %s278
        %s280 = sand.u32 %s51, 1
        %s281 = smul.addr %s280, 8
        %s282 = scalar_lea.vmem [#allocation7], %s281
        // Predicated region
        $region33: #{tpu_custom_call.1} parent=31 // pred_check
          %p283 = pneg %p64
        $region34: #{tpu_custom_call.1} parent=31 // pred_check_branch
          %285 = sbr.rel (%p283) target = $region36
        $region35: #{tpu_custom_call.1} parent=31 // pred_region
          %286 = dma.done %s279, 128
        $region36: #{tpu_custom_call.1} parent=31 // pred_fallthru
          _
        %s287 = sand.u32 %s79, 1
        %s288 = scalar_lea.sflag [#allocation11], %s287
        %s289 = sand.u32 %s79, 1
        %s290 = smul.addr %s289, 2
        %s291 = scalar_lea.vmem [#allocation10], %s290
        // Predicated region
        $region37: #{tpu_custom_call.1} parent=31 // pred_check
          %p292 = pneg %p92
        $region38: #{tpu_custom_call.1} parent=31 // pred_check_branch
          %294 = sbr.rel (%p292) target = $region40
        $region39: #{tpu_custom_call.1} parent=31 // pred_region
          %295 = dma.done %s288, 32
        $region40: #{tpu_custom_call.1} parent=31 // pred_fallthru
          _
        %s296 = sand.u32 %s51, 1
        %s297 = scalar_lea.sflag [#allocation8], %s296
        %s298 = sand.u32 %s51, 1
        %s299 = smul.addr %s298, 8
        %s300 = scalar_lea.vmem [#allocation7], %s299
        %p301 = pneg %p64
        %p302 = pneg %p61
        %s303 = sand.u32 %s79, 1
        %s304 = scalar_lea.sflag [#allocation11], %s303
        %s305 = sand.u32 %s79, 1
        %s306 = smul.addr %s305, 2
        %s307 = scalar_lea.vmem [#allocation10], %s306
        %p308 = pneg %p92
        %p309 = pneg %p89
        %s310 = smul.u32 2, %s34
        %p311 = scmp.lt.s32.totalorder %s33, 1
        %s312 = scalar_select %p311, %s33, 1
        %p313 = scmp.lt.s32.totalorder %s310, 1
        %s314 = scalar_select %p313, %s310, 1
        %s315 = smul.addr %s312, 2
        %s316 = sadd.s32 %s314, %s315
        %s317 = scalar_lea.vmem %s2, %s316
        %p318 = pneg %p120
        %p319 = pneg %p117
        %p320 = pneg %p146
        %p321 = pneg %p143
        %s322 = sand.u32 %s133, 1
        %s323 = scalar_lea.sflag [#allocation9], %s322
        %s324 = sand.u32 %s133, 1
        %s325 = smul.addr %s324, 8
        %s326 = scalar_lea.vmem [#allocation12], %s325
        %p327 = pneg %p172
        %p328 = pneg %p169
        %s329 = sand.u32 %s29, 1
        %s330 = scalar_lea.sflag [#allocation14], %s329
        %s331 = sand.u32 %s159, 1
        %s332 = smul.addr %s331, 8
        %s333 = scalar_lea.vmem [#allocation13], %s332
        %p334 = pneg %p198
        %p335 = pneg %p195
        %s336 = sand.u32 %s29, 1
        %s337 = scalar_lea.sflag [#allocation14], %s336
        %s338 = sand.u32 %s185, 1
        %s339 = smul.addr %s338, 8
        %s340 = scalar_lea.vmem [#allocation15], %s339
        %s341 = smul.u32 2, %s34
        %s342 = smul.u32 2, %s34
        %s343 = smul.u32 2, %s34
        %p344 = scmp.lt.s32.totalorder %s33, 1
        %s345 = scalar_select %p344, %s33, 1
        %p346 = scmp.lt.s32.totalorder %s343, 1
        %s347 = scalar_select %p346, %s343, 1
        %s348 = smul.addr %s345, 2
        %s349 = sadd.s32 %s347, %s348
        %s350 = scalar_lea.vmem %s2, %s349
        %s351 = smul.u32 2, %s34
        %p352 = scmp.eq.s32.totalorder %s34, 0
        // Predicated region
        $region41: #{tpu_custom_call.1} parent=31 // pred_check
          %p353 = pneg %p352
        $region42: #{tpu_custom_call.1} parent=31 // pred_check_branch
          %355 = sbr.rel (%p353) target = $region44
        $region43: #{tpu_custom_call.1} parent=31 // pred_region
          %356 = vst [vmem:[#allocation2] sm:$0xff] 0.0
          %357 = vst [vmem:[#allocation2 + $0x8] sm:$0xff] 0.0
          %358 = vst [vmem:[#allocation3] sm:$0xff] 0.0
          %359 = vst [vmem:[#allocation3 + $0x8] sm:$0xff] 0.0
          %360 = vst [vmem:[#allocation4] sm:$0xff] 0.0
          %361 = vst [vmem:[#allocation4 + $0x8] sm:$0xff] 0.0
          %362 = vst [vmem:[#allocation5] sm:$0xff] 0.0
          %363 = vst [vmem:[#allocation5 + $0x8] sm:$0xff] 0.0
          %v364 = vlaneseq
          %vm365 = vcmp.ge.s32.totalorder %v364, 0
          %vm366 = vcmp.lt.s32.totalorder %v364, 256
          %vm367 = vmand %vm365, %vm366
          %368 = vst.msk [vmem:[#allocation6] sm:$0x3] %vm367, 0.0
        $region44: #{tpu_custom_call.1} parent=31 // pred_fallthru
          _
        %v369 = vld [vmem:[%s282] sm:$0xff]
        %v370 = vunpack.c.l.bf16 %v369
        %v371 = vunpack.c.h.bf16 %v369
        %v372 = vld [vmem:[%s291] sm:$0x3]
        %v373 = vld [vmem:[%s350] sm:$0x3]
        %v374 = vlaneseq
        %v375 = vshrl.u32 %v374, 7
        %v376 = vlaneseq
        %v377 = vshrl.u32 %v376, 7
        %v378 = vsub.s32 0, %v377
        %v379 = vrot.slane %v372, %v378
        %v380 = vlaneseq
        %v381 = vshrl.u32 %v380, 7
        %v382 = vsub.s32 1, %v381
        %v383 = vrot.slane %v372, %v382
        %vm384 = vcmp.eq.s32.totalorder %v379, %v375
        %vm385 = vcmp.eq.s32.totalorder %v383, %v375
        %v386 = vsel %vm384, 1, 0
        %v387 = vsel %vm385, 1, 0
        %v388 = vcvt.s32.f32 %v386
        %v389 = vcvt.s32.f32 %v387
        %v390 = vand.u32 2147483647, %v370
        %v391 = vand.u32 2147483647, %v371
        %v392 = vsub.f32 0.0, %v390
        %v393 = vsub.f32 0.0, %v391
        %v394 = vmul.f32 %v392, 1.442695
        %v395 = vpow.pop %v394
        %v396 = vmul.f32 %v393, 1.442695
        %v397 = vpow.pop %v396
        %v398 = vadd.f32 %v395, 1.0
        %v399 = vadd.f32 %v397, 1.0
        %v400 = vlog2.pop %v398
        %v401 = vmul.f32 %v400, 0.6931472
        %v402 = vlog2.pop %v399
        %v403 = vmul.f32 %v402, 0.6931472
        %v404 = vmax.f32 %v370, 0.0
        %v405 = vmax.f32 %v371, 0.0
        %v406 = vmul.f32 %v370, %v388
        %v407 = vmul.f32 %v371, %v389
        %v408 = vsub.f32 %v404, %v406
        %v409 = vsub.f32 %v405, %v407
        %v410 = vadd.f32 %v408, %v401
        %v411 = vadd.f32 %v409, %v403
        %v412 = vrcp.pop %v398
        %v413 = vrcp.pop %v399
        %vm414 = vcmp.ge.f32.partialorder %v370, 0.0
        %vm415 = vcmp.ge.f32.partialorder %v371, 0.0
        %v416 = vmul.f32 %v395, %v412
        %v417 = vmul.f32 %v397, %v413
        %v418 = vsel %vm414, %v412, %v416
        %v419 = vsel %vm415, %v413, %v417
        %v421 = vlaneseq
        %v422 = vshrl.u32 %v421, 7
        %v423 = vsub.s32 0, %v422
        %v424 = vrot.slane %v373, %v423
        %v425 = vlaneseq
        %v426 = vshrl.u32 %v425, 7
        %v427 = vsub.s32 1, %v426
        %v428 = vrot.slane %v373, %v427
        %v431 = vmul.f32 %v388, %v424
        %v432 = vmul.f32 %v389, %v428
        %v433 = vmul.f32 %v418, %v424
        %v434 = vmul.f32 %v419, %v428
        %v435 = vld [vmem:[#allocation2] sm:$0xff]
        %v436 = vld [vmem:[#allocation2 + $0x8] sm:$0xff]
        %v437 = vmul.f32 %v410, %v424
        %v438 = vmul.f32 %v411, %v428
        %v439 = vadd.f32 %v435, %v437
        %v440 = vadd.f32 %v436, %v438
        %441 = vst [vmem:[#allocation2] sm:$0xff] %v439
        %442 = vst [vmem:[#allocation2 + $0x8] sm:$0xff] %v440
        %v443 = vld [vmem:[#allocation3] sm:$0xff]
        %v444 = vld [vmem:[#allocation3 + $0x8] sm:$0xff]
        %v445 = vmul.f32 %v433, %v388
        %v446 = vmul.f32 %v434, %v389
        %v447 = vadd.f32 %v443, %v445
        %v448 = vadd.f32 %v444, %v446
        %449 = vst [vmem:[#allocation3] sm:$0xff] %v447
        %450 = vst [vmem:[#allocation3 + $0x8] sm:$0xff] %v448
        %v451 = vld [vmem:[#allocation4] sm:$0xff]
        %v452 = vld [vmem:[#allocation4 + $0x8] sm:$0xff]
        %v453 = vadd.f32 %v451, %v433
        %v454 = vadd.f32 %v452, %v434
        %455 = vst [vmem:[#allocation4] sm:$0xff] %v453
        %456 = vst [vmem:[#allocation4 + $0x8] sm:$0xff] %v454
        %v457 = vld [vmem:[#allocation5] sm:$0xff]
        %v458 = vld [vmem:[#allocation5 + $0x8] sm:$0xff]
        %v459 = vadd.f32 %v457, %v431
        %v460 = vadd.f32 %v458, %v432
        %461 = vst [vmem:[#allocation5] sm:$0xff] %v459
        %462 = vst [vmem:[#allocation5 + $0x8] sm:$0xff] %v460
        %v463 = vld [vmem:[#allocation6] sm:$0x3]
        %v464 = vadd.f32 %v463, %v373
        %v465 = vlaneseq
        %vm466 = vcmp.ge.s32.totalorder %v465, 0
        %vm467 = vcmp.lt.s32.totalorder %v465, 256
        %vm468 = vmand %vm466, %vm467
        %469 = vst.msk [vmem:[#allocation6] sm:$0x3] %vm468, %v464
        // Predicated region
        $region45: #{tpu_custom_call.1} parent=31 // pred_check
          %p470 = pneg %p352
        $region46: #{tpu_custom_call.1} parent=31 // pred_check_branch
          %472 = sbr.rel (%p470) target = $region48
        $region47: #{tpu_custom_call.1} parent=31 // pred_region
          %v473 = vld [vmem:[#allocation2] sm:$0xff]
          %v474 = vld [vmem:[#allocation2 + $0x8] sm:$0xff]
          %v475 = vadd.f32 %v473, %v474
          %476 = vadd.xlane.f32.xlu0 %v475
          %v477 = vpop.xlane.xlu0 %476
          %v478 = vld [vmem:[#allocation3] sm:$0xff]
          %v479 = vld [vmem:[#allocation3 + $0x8] sm:$0xff]
          %v480 = vadd.f32 %v478, %v479
          %481 = vadd.xlane.f32.xlu0 %v480
          %v482 = vpop.xlane.xlu0 %481
          %v483 = vld [vmem:[#allocation4] sm:$0xff]
          %v484 = vld [vmem:[#allocation4 + $0x8] sm:$0xff]
          %v485 = vadd.f32 %v483, %v484
          %486 = vadd.xlane.f32.xlu0 %v485
          %v487 = vpop.xlane.xlu0 %486
          %v488 = vld [vmem:[#allocation5] sm:$0xff]
          %v489 = vld [vmem:[#allocation5 + $0x8] sm:$0xff]
          %v490 = vadd.f32 %v488, %v489
          %491 = vadd.xlane.f32.xlu0 %v490
          %v492 = vpop.xlane.xlu0 %491
          %v493 = vld [vmem:[#allocation6] sm:$0x3]
          %v495 = vlaneseq
          %v496 = vshrl.u32 %v495, 7
          %v497 = vsub.s32 0, %v496
          %v498 = vrot.slane %v493, %v497
          %v499 = vlaneseq
          %v500 = vshrl.u32 %v499, 7
          %v501 = vsub.s32 1, %v500
          %v502 = vrot.slane %v493, %v501
          %vm505 = vcmask 1040384
          %v506 = vsel %vm505, %v498, 0.0
          %v507 = vsel %vm505, %v502, 0.0
          %v508 = vadd.f32 %v506, %v507
          %509 = vadd.xlane.f32.xlu0 %v508
          %v510 = vpop.xlane.xlu0 %509
          %v511 = vmax.f32 %v510, 1.0
          %v512 = vlaneseq
          %v513 = vshrl.u32 %v512, 7
          %v514 = vsub.s32 0, %v513
          %v515 = vrot.slane %v511, %v514
          %v516 = vrcp.pop %v515
          %v517 = vmul.f32 %v477, %v516
          %v518 = vmul.f32 %v482, 2.0
          %v519 = vadd.f32 %v518, 1.0
          %v520 = vadd.f32 %v487, %v492
          %v521 = vadd.f32 %v520, 1.0
          %v522 = vrcp.pop %v521
          %v523 = vmul.f32 %v519, %v522
          %v524 = vsub.f32 1.0, %v523
          %525 = vst [vmem:[%s326] sm:$0xff] %v517
          %526 = vst [vmem:[%s333] sm:$0xff] %v524
          %527 = vst [vmem:[%s340] sm:$0xff] %v492
        $region48: #{tpu_custom_call.1} parent=31 // pred_fallthru
          _
        %s528 = sand.u32 %s133, 1
        %s529 = scalar_lea.sflag [#allocation9], %s528
        %s530 = sand.u32 %s133, 1
        %s531 = smul.addr %s530, 8
        %s532 = scalar_lea.vmem [#allocation12], %s531
        %s533 = sand.u32 %s29, 1
        %s534 = scalar_lea.sflag [#allocation14], %s533
        %s535 = sand.u32 %s159, 1
        %s536 = smul.addr %s535, 8
        %s537 = scalar_lea.vmem [#allocation13], %s536
        %s538 = sand.u32 %s29, 1
        %s539 = scalar_lea.sflag [#allocation14], %s538
        %s540 = sand.u32 %s185, 1
        %s541 = smul.addr %s540, 8
        %s542 = scalar_lea.vmem [#allocation15], %s541
        // Predicated region
        $region49: #{tpu_custom_call.1} parent=31 // pred_check
          %p543 = pneg %p143
        $region50: #{tpu_custom_call.1} parent=31 // pred_check_branch
          %545 = sbr.rel (%p543) target = $region52
        $region51: #{tpu_custom_call.1} parent=31 // pred_region
          %s547 = ssub.s32 128, 128
          %548 = vsyncadd %s529, %s547
          %s549 = smul.addr %s33, 128
          %s550 = scalar_lea.hbm %s3, %s549
          %s552 = sshll.u32 %s532, 4
          %s553 = int_to_ptr.vmem [resolvable:$true] %s552
          %555 = dma.vmem_to_hbm [thread:$0]  %s553, 128, %s550, %s529
        $region52: #{tpu_custom_call.1} parent=31 // pred_fallthru
          _
        // Predicated region
        $region53: #{tpu_custom_call.1} parent=31 // pred_check
          %p556 = pneg %p169
        $region54: #{tpu_custom_call.1} parent=31 // pred_check_branch
          %558 = sbr.rel (%p556) target = $region56
        $region55: #{tpu_custom_call.1} parent=31 // pred_region
          %s560 = ssub.s32 128, 128
          %561 = vsyncadd %s534, %s560
          %s562 = smul.addr %s33, 128
          %s563 = scalar_lea.hbm %s4, %s562
          %s565 = sshll.u32 %s537, 4
          %s566 = int_to_ptr.vmem [resolvable:$true] %s565
          %568 = dma.vmem_to_hbm [thread:$0]  %s566, 128, %s563, %s534
        $region56: #{tpu_custom_call.1} parent=31 // pred_fallthru
          _
        // Predicated region
        $region57: #{tpu_custom_call.1} parent=31 // pred_check
          %p569 = pneg %p195
        $region58: #{tpu_custom_call.1} parent=31 // pred_check_branch
          %571 = sbr.rel (%p569) target = $region60
        $region59: #{tpu_custom_call.1} parent=31 // pred_region
          %s573 = ssub.s32 128, 128
          %574 = vsyncadd %s539, %s573
          %s575 = smul.addr %s33, 128
          %s576 = scalar_lea.hbm %s5, %s575
          %s578 = sshll.u32 %s542, 4
          %s579 = int_to_ptr.vmem [resolvable:$true] %s578
          %581 = dma.vmem_to_hbm [thread:$0]  %s579, 128, %s576, %s539
        $region60: #{tpu_custom_call.1} parent=31 // pred_fallthru
          _
      $region32: #{tpu_custom_call.1} parent=5 // pred_fallthru
        _
      %p582 = scmp.le.s32.totalorder 2, %s24
      // Predicated region
      $region61: #{tpu_custom_call.1} parent=5 // pred_check
        %p583 = pneg %p582
      $region62: #{tpu_custom_call.1} parent=5 // pred_check_branch
        %585 = sbr.rel (%p583) target = $region64
      $region63: #{tpu_custom_call.1} parent=5 // pred_region
        %s586 = ssub.s32 %s24, 2
        // Predicated region
        $region65: #{tpu_custom_call.1} parent=63 // pred_check
          %p587 = pneg %p149
        $region66: #{tpu_custom_call.1} parent=63 // pred_check_branch
          %589 = sbr.rel (%p587) target = $region68
        $region67: #{tpu_custom_call.1} parent=63 // pred_region
          %s590 = sand.u32 %s134, 1
          %s591 = scalar_lea.sflag [#allocation9], %s590
          %s592 = sand.u32 %s134, 1
          %s593 = smul.addr %s592, 8
          %s594 = scalar_lea.vmem [#allocation12], %s593
          %595 = dma.done %s591, 128
        $region68: #{tpu_custom_call.1} parent=63 // pred_fallthru
          _
        // Predicated region
        $region69: #{tpu_custom_call.1} parent=63 // pred_check
          %p596 = pneg %p175
        $region70: #{tpu_custom_call.1} parent=63 // pred_check_branch
          %598 = sbr.rel (%p596) target = $region72
        $region71: #{tpu_custom_call.1} parent=63 // pred_region
          %s599 = sand.u32 %s30, 1
          %s600 = scalar_lea.sflag [#allocation14], %s599
          %s601 = sand.u32 %s160, 1
          %s602 = smul.addr %s601, 8
          %s603 = scalar_lea.vmem [#allocation13], %s602
          %604 = dma.done %s600, 128
        $region72: #{tpu_custom_call.1} parent=63 // pred_fallthru
          _
        // Predicated region
        $region73: #{tpu_custom_call.1} parent=63 // pred_check
          %p605 = pneg %p201
        $region74: #{tpu_custom_call.1} parent=63 // pred_check_branch
          %607 = sbr.rel (%p605) target = $region76
        $region75: #{tpu_custom_call.1} parent=63 // pred_region
          %s608 = sand.u32 %s30, 1
          %s609 = scalar_lea.sflag [#allocation14], %s608
          %s610 = sand.u32 %s186, 1
          %s611 = smul.addr %s610, 8
          %s612 = scalar_lea.vmem [#allocation15], %s611
          %613 = dma.done %s609, 128
        $region76: #{tpu_custom_call.1} parent=63 // pred_fallthru
          _
      $region64: #{tpu_custom_call.1} parent=5 // pred_fallthru
        _
    $region6: #{tpu_custom_call.1} parent=1 // loop_footer
      %s28 = sadd.s32 1, %s24
    $region7: #{tpu_custom_call.1} parent=1 // loop_footer_branch
      %23 = sbr.rel target = $region3
    $region8: #{tpu_custom_call.1} parent=1 // loop_exit
      _
    %614 = vsyncpa [#allocation8], 1
    %s615 = scalar_lea.sflag [#allocation8], 1
    %616 = vsyncpa %s615, 1
    %617 = vsyncpa [#allocation11], 1
    %s618 = scalar_lea.sflag [#allocation11], 1
    %619 = vsyncpa %s618, 1
    %620 = vsyncpa [#allocation9], 1
    %s621 = scalar_lea.sflag [#allocation9], 1
    %622 = vsyncpa %s621, 1
    %623 = vsyncpa [#allocation14], 1
    %s624 = scalar_lea.sflag [#allocation14], 1
    %625 = vsyncpa %s624, 1

</llo_original>
